<compile_context>
chip_gen: v5e
topology: v5e:2x2
jax: 0.10.0
libtpu: 0.0.40
codegen_flags: <defaults>
</compile_context>

<pallas_src>
import functools

import jax
import jax.numpy as jnp
import numpy as np
from jax import lax
from jax.experimental import pallas as pl
from jax.experimental.pallas import tpu as pltpu

# ------------------------- hyperparameters (small) -------------------------
VOCAB = 64          # vocab_size
EMBD = 32           # embd_size
ANS = 16            # ans_size (stored as out_dim; forward returns vocab-sized logits)
MAX_STORY = 8       # max_story_len
HOPS = 3
BS = 2
STORY_LEN = 8
SENT_LEN = 6
Q_LEN = 5


def _round_up(x, m):
    return ((x + m - 1) // m) * m


def _cdiv(a, b):
    return -(-a // b)


def _device_kind():
    try:
        return jax.devices()[0].device_kind.lower()
    except Exception:
        return ""


# ------------------------------- kernel ------------------------------------
def memnn_kernel(tok_ref, a_all_ref, a_lastT_ref, out_ref, *,
                 hops, tb, story_len, story_rows, embd, count_dtype):
    # Per grid step (one batch tile of `tb` samples):
    #   tok_ref    : (SR + QR, T)          int32  -- SR story rows then QR question rows
    #   a_all_ref  : (V_pad, (hops+1)*D)   bf16   -- fused [A[0] | A[1] | ... | A[hops]]
    #   a_lastT_ref: (D, V_pad)            bf16   -- A[hops].T, vocab-padded
    #   out_ref    : (tb, V_pad)           f32
    R, T = tok_ref.shape
    v_pad = a_all_ref.shape[0]
    h1d = (hops + 1) * embd

    tok = tok_ref[...]                                       # (R, T) int32

    # ---- bag-of-words embedding lookup as one-hot counts.  A row 0 is zero, so
    # ---- padding token 0 contributes nothing (matches weight.data[0] = 0). ----
    lane_ids = lax.broadcasted_iota(jnp.int32, (R, v_pad), 1)
    ones = jnp.ones((R, v_pad), count_dtype)                 # hoisted broadcasts
    zeros = jnp.zeros((R, v_pad), count_dtype)
    cnt = zeros
    for t in range(T):                                       # static, tiny sentence length
        cnt = cnt + jnp.where(tok[:, t:t + 1] == lane_ids, ones, zeros)

    # TODO(synk): nn.Dropout(p=0.1) train-mode masking not reproduced (eval/identity).
    # TODO(synk): one-hot counts only scale to small vocab; at real vocab sizes this
    #             should become a token-id gather (scalar-prefetch / DMA path).

    # ---- single fused MXU matmul: every row gets [A[0]..A[hops]] sums at once ----
    # counts are small exact integers -> bf16 LHS is lossless.
    emb = jnp.dot(cnt.astype(jnp.bfloat16), a_all_ref[...],
                  preferred_element_type=jnp.float32)        # (R, (hops+1)*D) f32

    # story rows -> (tb, L, h1d); question rows -> u (tb, 1, D)  (B == A[0])
    e3 = emb[:tb * story_len, :].reshape(tb, story_len, h1d)
    u = emb[story_rows:story_rows + tb, 0:embd].reshape(tb, 1, embd)

    for k in range(hops):
        # m_k = sum_t A[k](x_t),  c_k = sum_t A[k+1](x_t)               (tb, L, D)
        m = e3[:, :, k * embd:(k + 1) * embd]
        c = e3[:, :, (k + 1) * embd:(k + 2) * embd]

        # attention over story positions — VPU multiply + lane reduce   (tb, L, 1)
        s = jnp.sum(m * u, axis=-1, keepdims=True)
        s = s - jnp.max(s, axis=1, keepdims=True)
        p = jnp.exp(s)
        p = p * pl.reciprocal(jnp.sum(p, axis=1, keepdims=True), approx=True)

        # o = p @ c — VPU multiply + sublane reduce                     (tb, 1, D)
        o = jnp.sum(p * c, axis=1, keepdims=True)
        u = o + u

    # final projection: u @ A[hops].T — bf16 MXU, f32 accumulate, lane-dense store
    u2 = u.reshape(tb, embd).astype(jnp.bfloat16)
    out_ref[...] = jnp.dot(u2, a_lastT_ref[...], preferred_element_type=jnp.float32)


# ------------------------------- wrapper ------------------------------------
def _pick_batch_tile(bs, L, T, v_pad, h1d, *, budget_bytes, cap=512):
    """Largest per-step batch tile that keeps per-step VMEM comfortably bounded."""
    rows = L + 1                                            # live rows per sample
    per_sample = rows * (v_pad * 4 + 3 * h1d * 4)           # cnt/emb/attn f32 temporaries
    per_sample += 2 * rows * T * 4                          # double-buffered token block
    per_sample += 2 * v_pad * 4                             # double-buffered output block
    tile = max(8, budget_bytes // max(per_sample, 1))
    return int(max(1, min(bs, min(cap, tile))))


def memnn_forward(x, q, a_stack, *, hops=HOPS, batch_tile=None):
    # TODO(synk): temporal_encoding / position_encoding branches (te=pe=False defaults)
    #             are not implemented.
    bs, L, S = x.shape
    _, QL = q.shape
    H1, V, D = a_stack.shape
    assert H1 == hops + 1

    V_pad = _round_up(max(V, 128), 128)       # lane-dense counts / logits
    T = _round_up(max(S, QL), 8)              # shared token width, 32B-aligned rows
    h1d = H1 * D

    kind = _device_kind()
    multi_tc = ("7x" in kind) or ("v7" in kind)              # v7x: 2 TCs, only 64 MiB VMEM
    # bf16 count accumulation where the VPU has native bf16 (v6e/v7x); f32 elsewhere.
    count_dtype = (jnp.bfloat16
                   if ("v6" in kind or "7x" in kind or "v7" in kind or "trillium" in kind)
                   else jnp.float32)

    # --- generation-aware batch tiling: fold a big batch tile into the block -----
    if batch_tile is None:
        budget = (12 << 20) if multi_tc else (16 << 20)
        batch_tile = _pick_batch_tile(bs, L, T, V_pad, h1d, budget_bytes=budget)
    nb = _cdiv(bs, batch_tile)
    if multi_tc and bs > batch_tile and nb % 2 == 1:
        # keep nb even so dimension_semantics=("parallel",) shards across both TCs
        nb += 1
        batch_tile = _cdiv(bs, nb)
        nb = _cdiv(bs, batch_tile)
    bs_pad = nb * batch_tile

    SR = _round_up(batch_tile * L, 8)         # story rows per tile (sublane aligned)
    QR = _round_up(batch_tile, 8)             # question rows per tile (sublane aligned)

    # --- pack tokens: per tile -> [SR story rows | QR question rows], no dead rows ---
    x_tok = jnp.zeros((bs_pad, L, T), jnp.int32)
    x_tok = x_tok.at[:bs, :, :S].set(x.astype(jnp.int32))
    story = x_tok.reshape(nb, batch_tile * L, T)
    if SR != batch_tile * L:
        story = jnp.pad(story, ((0, 0), (0, SR - batch_tile * L), (0, 0)))

    q_tok = jnp.zeros((bs_pad, T), jnp.int32)
    q_tok = q_tok.at[:bs, :QL].set(q.astype(jnp.int32))
    ques = q_tok.reshape(nb, batch_tile, T)
    if QR != batch_tile:
        ques = jnp.pad(ques, ((0, 0), (0, QR - batch_tile), (0, 0)))

    tokens = jnp.concatenate([story, ques], axis=1)          # (nb, SR+QR, T)
    R = SR + QR

    # --- fused embedding operand: (V_pad, (hops+1)*D), bf16, zero-padded rows -----
    a_all = jnp.transpose(a_stack, (1, 0, 2)).reshape(V, h1d)
    a_all = jnp.pad(a_all, ((0, V_pad - V), (0, 0))).astype(jnp.bfloat16)

    # --- final projection operand: A[hops].T padded along vocab, bf16 -------------
    a_lastT = jnp.pad(a_stack[hops].T, ((0, 0), (0, V_pad - V))).astype(jnp.bfloat16)

    # --- explicit scoped-VMEM limit sized from the chosen tile --------------------
    est = (2 * R * T * 4 + 2 * batch_tile * V_pad * 4        # pipelined token/out blocks
           + V_pad * h1d * 2 + D * V_pad * 2                 # resident bf16 operands
           + R * V_pad * 4 + 3 * R * h1d * 4)                # cnt + emb/attn temporaries
    vmem_limit = int(max(16 << 20, min(48 << 20, 2 * est)))  # stays under v7x's 64 MiB

    kernel = functools.partial(memnn_kernel, hops=hops, tb=batch_tile,
                               story_len=L, story_rows=SR, embd=D,
                               count_dtype=count_dtype)
    out = pl.pallas_call(
        kernel,
        out_shape=jax.ShapeDtypeStruct((nb, batch_tile, V_pad), jnp.float32),
        grid=(nb,),
        in_specs=[
            pl.BlockSpec((None, R, T), lambda b: (b, 0, 0)),       # packed token tile
            pl.BlockSpec((V_pad, h1d), lambda b: (0, 0)),          # fused A (resident)
            pl.BlockSpec((D, V_pad), lambda b: (0, 0)),            # A[hops].T (resident)
        ],
        out_specs=pl.BlockSpec((None, batch_tile, V_pad), lambda b: (b, 0, 0)),
        compiler_params=pltpu.CompilerParams(
            dimension_semantics=("parallel",),
            vmem_limit_bytes=vmem_limit),
    )(tokens, a_all, a_lastT)

    # drop batch padding and phantom vocab lanes
    return out.reshape(bs_pad, V_pad)[:bs, :V]


# -------------------------- pure-JAX reference -------------------------------
def memnn_reference(x, q, a_stack, *, hops=HOPS):
    bs, L, S = x.shape
    u = jnp.sum(a_stack[0][q], axis=1)                                   # (bs, D)
    xf = x.reshape(bs * L, S)
    for k in range(hops):
        m = jnp.sum(a_stack[k][xf], axis=1).reshape(bs, L, -1)
        c = jnp.sum(a_stack[k + 1][xf], axis=1).reshape(bs, L, -1)
        scores = jnp.einsum('bld,bd->bl', m, u)
        p = jax.nn.softmax(scores, axis=-1)
        o = jnp.einsum('bl,bld->bd', p, c)
        u = o + u
    return u @ a_stack[hops].T                                           # (bs, vocab)


# --------------------------------- main --------------------------------------
if __name__ == "__main__":
    key = jax.random.PRNGKey(0)
    k_a, k_x, k_q = jax.random.split(key, 3)

    # Deterministic parameter init: A[i] ~ N(0, 0.1), row 0 zeroed (as in __init__).
    a_stack = 0.1 * jax.random.normal(k_a, (HOPS + 1, VOCAB, EMBD), dtype=jnp.float32)
    a_stack = a_stack.at[:, 0, :].set(0.0)

    x = jax.random.randint(k_x, (BS, STORY_LEN, SENT_LEN), 0, VOCAB, dtype=jnp.int32)
    q = jax.random.randint(k_q, (BS, Q_LEN), 0, VOCAB, dtype=jnp.int32)

    out = jax.block_until_ready(memnn_forward(x, q, a_stack))
    ref = jax.block_until_ready(memnn_reference(x, q, a_stack))

    assert out.shape == (BS, VOCAB), out.shape
    # tolerance covers bf16 MXU operands (tables + final projection) + approx EUP reciprocal
    np.testing.assert_allclose(np.asarray(out), np.asarray(ref), rtol=3e-2, atol=3e-2)
    print("KERNEL_OK")
</pallas_src>

<mosaic_0001>
module attributes {stable_mosaic.version = 11 : i64} {
  func.func @memnn_kernel(%arg0: i32, %arg1: memref<1x24x8xi32, #tpu.memory_space<vmem>>, %arg2: memref<128x128xbf16, #tpu.memory_space<vmem>>, %arg3: memref<32x128xbf16, #tpu.memory_space<vmem>>, %arg4: memref<1x2x128xf32, #tpu.memory_space<vmem>>) attributes {dimension_semantics = [#tpu.dimension_semantics<parallel>], iteration_bounds = array<i64: 1>, scalar_prefetch = 0 : i64, scratch_operands = 0 : i64, tpu.core_type = #tpu.core_type<tc>, window_params = [{transform_indices = @transform_0, window_bounds = array<i64: 1, 24, 8>}, {pipeline_mode = #tpu.pipeline_mode<synchronous>, transform_indices = @transform_1, window_bounds = array<i64: 128, 128>}, {pipeline_mode = #tpu.pipeline_mode<synchronous>, transform_indices = @transform_2, window_bounds = array<i64: 32, 128>}, {transform_indices = @transform_3, window_bounds = array<i64: 1, 2, 128>}]} {
    %c0 = arith.constant 0 : index
    %c0_0 = arith.constant 0 : index
    %c0_1 = arith.constant 0 : index
    %0 = vector.load %arg1[%c0, %c0_0, %c0_1] : memref<1x24x8xi32, #tpu.memory_space<vmem>>, vector<1x24x8xi32>
    %1 = vector.shape_cast %0 : vector<1x24x8xi32> to vector<24x8xi32>
    %2 = tpu.iota {dimensions = array<i32: 1>} : vector<24x128xi32>
    %cst = arith.constant 1.000000e+00 : f32
    %3 = vector.broadcast %cst : f32 to vector<24x128xf32>
    %cst_2 = arith.constant 0.000000e+00 : f32
    %4 = vector.broadcast %cst_2 : f32 to vector<24x128xf32>
    %5 = vector.extract_strided_slice %1 {offsets = [0, 0], sizes = [24, 1], strides = [1, 1]} : vector<24x8xi32> to vector<24x1xi32>
    %6 = vector.broadcast %5 : vector<24x1xi32> to vector<24x128xi32>
    %7 = arith.cmpi eq, %6, %2 : vector<24x128xi32>
    %8 = arith.select %7, %3, %4 : vector<24x128xi1>, vector<24x128xf32>
    %9 = arith.addf %4, %8 : vector<24x128xf32>
    %10 = vector.extract_strided_slice %1 {offsets = [0, 1], sizes = [24, 1], strides = [1, 1]} : vector<24x8xi32> to vector<24x1xi32>
    %11 = vector.broadcast %10 : vector<24x1xi32> to vector<24x128xi32>
    %12 = arith.cmpi eq, %11, %2 : vector<24x128xi32>
    %13 = arith.select %12, %3, %4 : vector<24x128xi1>, vector<24x128xf32>
    %14 = arith.addf %9, %13 : vector<24x128xf32>
    %15 = vector.extract_strided_slice %1 {offsets = [0, 2], sizes = [24, 1], strides = [1, 1]} : vector<24x8xi32> to vector<24x1xi32>
    %16 = vector.broadcast %15 : vector<24x1xi32> to vector<24x128xi32>
    %17 = arith.cmpi eq, %16, %2 : vector<24x128xi32>
    %18 = arith.select %17, %3, %4 : vector<24x128xi1>, vector<24x128xf32>
    %19 = arith.addf %14, %18 : vector<24x128xf32>
    %20 = vector.extract_strided_slice %1 {offsets = [0, 3], sizes = [24, 1], strides = [1, 1]} : vector<24x8xi32> to vector<24x1xi32>
    %21 = vector.broadcast %20 : vector<24x1xi32> to vector<24x128xi32>
    %22 = arith.cmpi eq, %21, %2 : vector<24x128xi32>
    %23 = arith.select %22, %3, %4 : vector<24x128xi1>, vector<24x128xf32>
    %24 = arith.addf %19, %23 : vector<24x128xf32>
    %25 = vector.extract_strided_slice %1 {offsets = [0, 4], sizes = [24, 1], strides = [1, 1]} : vector<24x8xi32> to vector<24x1xi32>
    %26 = vector.broadcast %25 : vector<24x1xi32> to vector<24x128xi32>
    %27 = arith.cmpi eq, %26, %2 : vector<24x128xi32>
    %28 = arith.select %27, %3, %4 : vector<24x128xi1>, vector<24x128xf32>
    %29 = arith.addf %24, %28 : vector<24x128xf32>
    %30 = vector.extract_strided_slice %1 {offsets = [0, 5], sizes = [24, 1], strides = [1, 1]} : vector<24x8xi32> to vector<24x1xi32>
    %31 = vector.broadcast %30 : vector<24x1xi32> to vector<24x128xi32>
    %32 = arith.cmpi eq, %31, %2 : vector<24x128xi32>
    %33 = arith.select %32, %3, %4 : vector<24x128xi1>, vector<24x128xf32>
    %34 = arith.addf %29, %33 : vector<24x128xf32>
    %35 = vector.extract_strided_slice %1 {offsets = [0, 6], sizes = [24, 1], strides = [1, 1]} : vector<24x8xi32> to vector<24x1xi32>
    %36 = vector.broadcast %35 : vector<24x1xi32> to vector<24x128xi32>
    %37 = arith.cmpi eq, %36, %2 : vector<24x128xi32>
    %38 = arith.select %37, %3, %4 : vector<24x128xi1>, vector<24x128xf32>
    %39 = arith.addf %34, %38 : vector<24x128xf32>
    %40 = vector.extract_strided_slice %1 {offsets = [0, 7], sizes = [24, 1], strides = [1, 1]} : vector<24x8xi32> to vector<24x1xi32>
    %41 = vector.broadcast %40 : vector<24x1xi32> to vector<24x128xi32>
    %42 = arith.cmpi eq, %41, %2 : vector<24x128xi32>
    %43 = arith.select %42, %3, %4 : vector<24x128xi1>, vector<24x128xf32>
    %44 = arith.addf %39, %43 : vector<24x128xf32>
    %45 = arith.truncf %44 : vector<24x128xf32> to vector<24x128xbf16>
    %c0_3 = arith.constant 0 : index
    %c0_4 = arith.constant 0 : index
    %46 = vector.load %arg2[%c0_3, %c0_4] : memref<128x128xbf16, #tpu.memory_space<vmem>>, vector<128x128xbf16>
    %cst_5 = arith.constant dense<0.000000e+00> : vector<24x128xf32>
    %47 = tpu.matmul %45, %46, %cst_5 {dimension_numbers = #tpu.dot_dimension_numbers<[1], [0], [0], [1], [0, 0, 1, 1], [], []>} : vector<24x128xbf16>, vector<128x128xbf16>, vector<24x128xf32> -> vector<24x128xf32>
    %48 = vector.extract_strided_slice %47 {offsets = [0, 0], sizes = [16, 128], strides = [1, 1]} : vector<24x128xf32> to vector<16x128xf32>
    %49 = vector.shape_cast %48 : vector<16x128xf32> to vector<2x8x128xf32>
    %50 = vector.extract_strided_slice %47 {offsets = [16, 0], sizes = [2, 32], strides = [1, 1]} : vector<24x128xf32> to vector<2x32xf32>
    %51 = vector.shape_cast %50 : vector<2x32xf32> to vector<2x1x32xf32>
    %52 = vector.extract_strided_slice %49 {offsets = [0, 0, 0], sizes = [2, 8, 32], strides = [1, 1, 1]} : vector<2x8x128xf32> to vector<2x8x32xf32>
    %53 = vector.extract_strided_slice %49 {offsets = [0, 0, 32], sizes = [2, 8, 32], strides = [1, 1, 1]} : vector<2x8x128xf32> to vector<2x8x32xf32>
    %54 = vector.broadcast %51 : vector<2x1x32xf32> to vector<2x8x32xf32>
    %55 = arith.mulf %52, %54 : vector<2x8x32xf32>
    %cst_6 = arith.constant dense<0.000000e+00> : vector<2x8xf32>
    %56 = vector.multi_reduction <add>, %55, %cst_6 [2] : vector<2x8x32xf32> to vector<2x8xf32>
    %57 = vector.shape_cast %56 : vector<2x8xf32> to vector<2x8x1xf32>
    %cst_7 = arith.constant dense<0xFF800000> : vector<2x1xf32>
    %58 = vector.multi_reduction <maximumf>, %57, %cst_7 [1] : vector<2x8x1xf32> to vector<2x1xf32>
    %59 = vector.shape_cast %58 : vector<2x1xf32> to vector<2x1x1xf32>
    %60 = vector.broadcast %59 : vector<2x1x1xf32> to vector<2x8x1xf32>
    %61 = arith.subf %57, %60 : vector<2x8x1xf32>
    %62 = math.exp %61 : vector<2x8x1xf32>
    %cst_8 = arith.constant dense<0.000000e+00> : vector<2x1xf32>
    %63 = vector.multi_reduction <add>, %62, %cst_8 [1] : vector<2x8x1xf32> to vector<2x1xf32>
    %64 = vector.shape_cast %63 : vector<2x1xf32> to vector<2x1x1xf32>
    %65 = tpu.reciprocal %64 {approx = true} : vector<2x1x1xf32> -> vector<2x1x1xf32>
    %66 = vector.broadcast %65 : vector<2x1x1xf32> to vector<2x8x1xf32>
    %67 = arith.mulf %62, %66 : vector<2x8x1xf32>
    %68 = vector.broadcast %67 : vector<2x8x1xf32> to vector<2x8x32xf32>
    %69 = arith.mulf %68, %53 : vector<2x8x32xf32>
    %cst_9 = arith.constant dense<0.000000e+00> : vector<2x32xf32>
    %70 = vector.multi_reduction <add>, %69, %cst_9 [1] : vector<2x8x32xf32> to vector<2x32xf32>
    %71 = vector.shape_cast %70 : vector<2x32xf32> to vector<2x1x32xf32>
    %72 = arith.addf %71, %51 : vector<2x1x32xf32>
    %73 = vector.extract_strided_slice %49 {offsets = [0, 0, 32], sizes = [2, 8, 32], strides = [1, 1, 1]} : vector<2x8x128xf32> to vector<2x8x32xf32>
    %74 = vector.extract_strided_slice %49 {offsets = [0, 0, 64], sizes = [2, 8, 32], strides = [1, 1, 1]} : vector<2x8x128xf32> to vector<2x8x32xf32>
    %75 = vector.broadcast %72 : vector<2x1x32xf32> to vector<2x8x32xf32>
    %76 = arith.mulf %73, %75 : vector<2x8x32xf32>
    %cst_10 = arith.constant dense<0.000000e+00> : vector<2x8xf32>
    %77 = vector.multi_reduction <add>, %76, %cst_10 [2] : vector<2x8x32xf32> to vector<2x8xf32>
    %78 = vector.shape_cast %77 : vector<2x8xf32> to vector<2x8x1xf32>
    %cst_11 = arith.constant dense<0xFF800000> : vector<2x1xf32>
    %79 = vector.multi_reduction <maximumf>, %78, %cst_11 [1] : vector<2x8x1xf32> to vector<2x1xf32>
    %80 = vector.shape_cast %79 : vector<2x1xf32> to vector<2x1x1xf32>
    %81 = vector.broadcast %80 : vector<2x1x1xf32> to vector<2x8x1xf32>
    %82 = arith.subf %78, %81 : vector<2x8x1xf32>
    %83 = math.exp %82 : vector<2x8x1xf32>
    %cst_12 = arith.constant dense<0.000000e+00> : vector<2x1xf32>
    %84 = vector.multi_reduction <add>, %83, %cst_12 [1] : vector<2x8x1xf32> to vector<2x1xf32>
    %85 = vector.shape_cast %84 : vector<2x1xf32> to vector<2x1x1xf32>
    %86 = tpu.reciprocal %85 {approx = true} : vector<2x1x1xf32> -> vector<2x1x1xf32>
    %87 = vector.broadcast %86 : vector<2x1x1xf32> to vector<2x8x1xf32>
    %88 = arith.mulf %83, %87 : vector<2x8x1xf32>
    %89 = vector.broadcast %88 : vector<2x8x1xf32> to vector<2x8x32xf32>
    %90 = arith.mulf %89, %74 : vector<2x8x32xf32>
    %cst_13 = arith.constant dense<0.000000e+00> : vector<2x32xf32>
    %91 = vector.multi_reduction <add>, %90, %cst_13 [1] : vector<2x8x32xf32> to vector<2x32xf32>
    %92 = vector.shape_cast %91 : vector<2x32xf32> to vector<2x1x32xf32>
    %93 = arith.addf %92, %72 : vector<2x1x32xf32>
    %94 = vector.extract_strided_slice %49 {offsets = [0, 0, 64], sizes = [2, 8, 32], strides = [1, 1, 1]} : vector<2x8x128xf32> to vector<2x8x32xf32>
    %95 = vector.extract_strided_slice %49 {offsets = [0, 0, 96], sizes = [2, 8, 32], strides = [1, 1, 1]} : vector<2x8x128xf32> to vector<2x8x32xf32>
    %96 = vector.broadcast %93 : vector<2x1x32xf32> to vector<2x8x32xf32>
    %97 = arith.mulf %94, %96 : vector<2x8x32xf32>
    %cst_14 = arith.constant dense<0.000000e+00> : vector<2x8xf32>
    %98 = vector.multi_reduction <add>, %97, %cst_14 [2] : vector<2x8x32xf32> to vector<2x8xf32>
    %99 = vector.shape_cast %98 : vector<2x8xf32> to vector<2x8x1xf32>
    %cst_15 = arith.constant dense<0xFF800000> : vector<2x1xf32>
    %100 = vector.multi_reduction <maximumf>, %99, %cst_15 [1] : vector<2x8x1xf32> to vector<2x1xf32>
    %101 = vector.shape_cast %100 : vector<2x1xf32> to vector<2x1x1xf32>
    %102 = vector.broadcast %101 : vector<2x1x1xf32> to vector<2x8x1xf32>
    %103 = arith.subf %99, %102 : vector<2x8x1xf32>
    %104 = math.exp %103 : vector<2x8x1xf32>
    %cst_16 = arith.constant dense<0.000000e+00> : vector<2x1xf32>
    %105 = vector.multi_reduction <add>, %104, %cst_16 [1] : vector<2x8x1xf32> to vector<2x1xf32>
    %106 = vector.shape_cast %105 : vector<2x1xf32> to vector<2x1x1xf32>
    %107 = tpu.reciprocal %106 {approx = true} : vector<2x1x1xf32> -> vector<2x1x1xf32>
    %108 = vector.broadcast %107 : vector<2x1x1xf32> to vector<2x8x1xf32>
    %109 = arith.mulf %104, %108 : vector<2x8x1xf32>
    %110 = vector.broadcast %109 : vector<2x8x1xf32> to vector<2x8x32xf32>
    %111 = arith.mulf %110, %95 : vector<2x8x32xf32>
    %cst_17 = arith.constant dense<0.000000e+00> : vector<2x32xf32>
    %112 = vector.multi_reduction <add>, %111, %cst_17 [1] : vector<2x8x32xf32> to vector<2x32xf32>
    %113 = vector.shape_cast %112 : vector<2x32xf32> to vector<2x1x32xf32>
    %114 = arith.addf %113, %93 : vector<2x1x32xf32>
    %115 = vector.shape_cast %114 : vector<2x1x32xf32> to vector<2x32xf32>
    %116 = arith.truncf %115 : vector<2x32xf32> to vector<2x32xbf16>
    %c0_18 = arith.constant 0 : index
    %c0_19 = arith.constant 0 : index
    %117 = vector.load %arg3[%c0_18, %c0_19] : memref<32x128xbf16, #tpu.memory_space<vmem>>, vector<32x128xbf16>
    %cst_20 = arith.constant dense<0.000000e+00> : vector<2x128xf32>
    %118 = tpu.matmul %116, %117, %cst_20 {dimension_numbers = #tpu.dot_dimension_numbers<[1], [0], [0], [1], [0, 0, 1, 1], [], []>} : vector<2x32xbf16>, vector<32x128xbf16>, vector<2x128xf32> -> vector<2x128xf32>
    %c0_21 = arith.constant 0 : index
    %c0_22 = arith.constant 0 : index
    %c0_23 = arith.constant 0 : index
    %119 = vector.load %arg4[%c0_21, %c0_22, %c0_23] : memref<1x2x128xf32, #tpu.memory_space<vmem>>, vector<1x2x128xf32>
    %120 = vector.shape_cast %119 : vector<1x2x128xf32> to vector<2x128xf32>
    %121 = vector.shape_cast %118 : vector<2x128xf32> to vector<1x2x128xf32>
    tpu.vector_store %arg4[%c0_21, %c0_22, %c0_23], %121 {strides = array<i32>} : memref<1x2x128xf32, #tpu.memory_space<vmem>>, vector<1x2x128xf32>,
    return
  }
  func.func @transform_0(%arg0: i32) -> (i32, i32, i32) {
    %c0_i32 = arith.constant 0 : i32
    %c0_i32_0 = arith.constant 0 : i32
    %c0_i32_1 = arith.constant 0 : i32
    return %arg0, %c0_i32, %c0_i32_0 : i32, i32, i32
  }
  func.func @transform_1(%arg0: i32) -> (i32, i32) {
    %c0_i32 = arith.constant 0 : i32
    %c0_i32_0 = arith.constant 0 : i32
    %c0_i32_1 = arith.constant 0 : i32
    return %c0_i32, %c0_i32_0 : i32, i32
  }
  func.func @transform_2(%arg0: i32) -> (i32, i32) {
    %c0_i32 = arith.constant 0 : i32
    %c0_i32_0 = arith.constant 0 : i32
    %c0_i32_1 = arith.constant 0 : i32
    return %c0_i32, %c0_i32_0 : i32, i32
  }
  func.func @transform_3(%arg0: i32) -> (i32, i32, i32) {
    %c0_i32 = arith.constant 0 : i32
    %c0_i32_0 = arith.constant 0 : i32
    %c0_i32_1 = arith.constant 0 : i32
    return %arg0, %c0_i32, %c0_i32_0 : i32, i32, i32
  }
}

</mosaic_0001>

<llo_original>
// kernel: tpu_custom_call.1
$region0: #{tpu_custom_call.1}
  #allocation0 [shape = 'u32[]', space=smem, size = 0x4, offset = 0x4, fixed_abs, tag = 'smem constant byte address 0x4 - core index']
  #allocation1 [shape = 'u32[72,128]{1,0:T(1,128)}', space=vmem, size = 0x9000, scoped, tag = 'internal scratch']
  %s0 = inlined_call_operand.vmem [shape: s32[1,24,8], index: 0, kind: input, shape index: {}]
  %s1 = inlined_call_operand.hbm [shape: bf16[128,128], index: 1, kind: input, shape index: {}]
  %s2 = inlined_call_operand.vmem [shape: bf16[32,128], index: 2, kind: input, shape index: {}]
  %s3 = inlined_call_operand.hbm [shape: f32[1,2,128], index: 3, kind: output, shape index: {}]
  %s4 = sld [smem:[#allocation0]]
  $region26: #{tpu_custom_call.1} parent=0
    _
  %s6 = ssub.s32 1, %s4
  %s7 = scalar_select 0, %s6, %s4
  $region1: #{tpu_custom_call.1} parent=0
    #allocation2 [shape = 'u8[32768]{0}', space=vmem, size = 0x8000, scoped, tag = 'input window, operand 1, single buffered']
    #allocation3 [shape = 's32[1]{0}', space=sflag, size = 0x4, scoped, tag = 'scoped memory for tpu_custom_call.1']
    #allocation4 [shape = 's32[1]{0}', space=sflag, size = 0x4, scoped, tag = 'scoped memory for tpu_custom_call.1']
    #allocation5 [shape = 'u8[1024]{0}', space=vmem, size = 0x400, scoped, tag = 'output window, operand 0, single buffered']
    %8 = vsyncpa [#allocation3], 0
    %9 = vsyncpa [#allocation4], 0
    // Predicated region
    $region2: #{tpu_custom_call.1} parent=1 // pred_check
      _
    $region3: #{tpu_custom_call.1} parent=1 // pred_check_branch
      %11 = sbr.rel (0) target = $region5
    $region4: #{tpu_custom_call.1} parent=1 // pred_region
      _
    $region5: #{tpu_custom_call.1} parent=1 // pred_fallthru
      _
    // Predicated region
    $region6: #{tpu_custom_call.1} parent=1 // pred_check
      _
    $region7: #{tpu_custom_call.1} parent=1 // pred_check_branch
      %13 = sbr.rel (0) target = $region9
    $region8: #{tpu_custom_call.1} parent=1 // pred_region
      %15 = vsyncadd [#allocation3], 0
      %s16 = sshll.u32 %s1, 4
      %s17 = int_to_ptr.hbm [resolvable:$true] %s16
      %s18 = sshll.u32 [#allocation2], 4
      %s19 = int_to_ptr.vmem [resolvable:$true] %s18
      %24 = dma.hbm_to_vmem [thread:$0]  %s17, 1024, %s19, [#allocation3], 64, 64, 4
    $region9: #{tpu_custom_call.1} parent=1 // pred_fallthru
      _
    // Predicated region
    $region10: #{tpu_custom_call.1} parent=1 // pred_check
      _
    $region11: #{tpu_custom_call.1} parent=1 // pred_check_branch
      %26 = sbr.rel (0) target = $region13
    $region12: #{tpu_custom_call.1} parent=1 // pred_region
      _
    $region13: #{tpu_custom_call.1} parent=1 // pred_fallthru
      _
    // Predicated region
    $region14: #{tpu_custom_call.1} parent=1 // pred_check
      _
    $region15: #{tpu_custom_call.1} parent=1 // pred_check_branch
      %28 = sbr.rel (0) target = $region17
    $region16: #{tpu_custom_call.1} parent=1 // pred_region
      %30 = dma.done [#allocation3], 1024
    $region17: #{tpu_custom_call.1} parent=1 // pred_fallthru
      _
    %v32 = vld [vmem:[%s0] sm:$0xff]
    %v33 = vld [vmem:[%s0 + $0x8] sm:$0xff]
    %v34 = vld [vmem:[%s0 + $0x10] sm:$0xff]
    %v35 = vlaneseq
    %v36 = vand.u32 %v35, 127
    %37 = vset.pattern.permute.xlu0 0
    %38 = vperm.xlu0 %37, %v32
    %v39 = vpop.permute.xlu0 %38
    %40 = vset.pattern.permute.xlu0 0
    %41 = vperm.xlu0 %40, %v33
    %v42 = vpop.permute.xlu0 %41
    %43 = vset.pattern.permute.xlu0 0
    %44 = vperm.xlu0 %43, %v34
    %v45 = vpop.permute.xlu0 %44
    %vm46 = vcmp.eq.s32.totalorder %v39, %v36
    %vm47 = vcmp.eq.s32.totalorder %v42, %v36
    %vm48 = vcmp.eq.s32.totalorder %v45, %v36
    %v49 = vsel %vm46, 1.0, 0.0
    %v50 = vsel %vm47, 1.0, 0.0
    %v51 = vsel %vm48, 1.0, 0.0
    %v52 = vadd.f32 %v49, 0.0
    %v53 = vadd.f32 %v50, 0.0
    %v54 = vadd.f32 %v51, 0.0
    %55 = vset.pattern.permute.xlu0 1
    %56 = vperm.xlu0 %55, %v32
    %v57 = vpop.permute.xlu0 %56
    %58 = vset.pattern.permute.xlu0 1
    %59 = vperm.xlu0 %58, %v33
    %v60 = vpop.permute.xlu0 %59
    %61 = vset.pattern.permute.xlu0 1
    %62 = vperm.xlu0 %61, %v34
    %v63 = vpop.permute.xlu0 %62
    %vm64 = vcmp.eq.s32.totalorder %v57, %v36
    %vm65 = vcmp.eq.s32.totalorder %v60, %v36
    %vm66 = vcmp.eq.s32.totalorder %v63, %v36
    %v67 = vsel %vm64, 1.0, 0.0
    %v68 = vsel %vm65, 1.0, 0.0
    %v69 = vsel %vm66, 1.0, 0.0
    %v70 = vadd.f32 %v52, %v67
    %v71 = vadd.f32 %v53, %v68
    %v72 = vadd.f32 %v54, %v69
    %73 = vset.pattern.permute.xlu0 2
    %74 = vperm.xlu0 %73, %v32
    %v75 = vpop.permute.xlu0 %74
    %76 = vset.pattern.permute.xlu0 2
    %77 = vperm.xlu0 %76, %v33
    %v78 = vpop.permute.xlu0 %77
    %79 = vset.pattern.permute.xlu0 2
    %80 = vperm.xlu0 %79, %v34
    %v81 = vpop.permute.xlu0 %80
    %vm82 = vcmp.eq.s32.totalorder %v75, %v36
    %vm83 = vcmp.eq.s32.totalorder %v78, %v36
    %vm84 = vcmp.eq.s32.totalorder %v81, %v36
    %v85 = vsel %vm82, 1.0, 0.0
    %v86 = vsel %vm83, 1.0, 0.0
    %v87 = vsel %vm84, 1.0, 0.0
    %v88 = vadd.f32 %v70, %v85
    %v89 = vadd.f32 %v71, %v86
    %v90 = vadd.f32 %v72, %v87
    %91 = vset.pattern.permute.xlu0 3
    %92 = vperm.xlu0 %91, %v32
    %v93 = vpop.permute.xlu0 %92
    %94 = vset.pattern.permute.xlu0 3
    %95 = vperm.xlu0 %94, %v33
    %v96 = vpop.permute.xlu0 %95
    %97 = vset.pattern.permute.xlu0 3
    %98 = vperm.xlu0 %97, %v34
    %v99 = vpop.permute.xlu0 %98
    %vm100 = vcmp.eq.s32.totalorder %v93, %v36
    %vm101 = vcmp.eq.s32.totalorder %v96, %v36
    %vm102 = vcmp.eq.s32.totalorder %v99, %v36
    %v103 = vsel %vm100, 1.0, 0.0
    %v104 = vsel %vm101, 1.0, 0.0
    %v105 = vsel %vm102, 1.0, 0.0
    %v106 = vadd.f32 %v88, %v103
    %v107 = vadd.f32 %v89, %v104
    %v108 = vadd.f32 %v90, %v105
    %109 = vset.pattern.permute.xlu0 4
    %110 = vperm.xlu0 %109, %v32
    %v111 = vpop.permute.xlu0 %110
    %112 = vset.pattern.permute.xlu0 4
    %113 = vperm.xlu0 %112, %v33
    %v114 = vpop.permute.xlu0 %113
    %115 = vset.pattern.permute.xlu0 4
    %116 = vperm.xlu0 %115, %v34
    %v117 = vpop.permute.xlu0 %116
    %vm118 = vcmp.eq.s32.totalorder %v111, %v36
    %vm119 = vcmp.eq.s32.totalorder %v114, %v36
    %vm120 = vcmp.eq.s32.totalorder %v117, %v36
    %v121 = vsel %vm118, 1.0, 0.0
    %v122 = vsel %vm119, 1.0, 0.0
    %v123 = vsel %vm120, 1.0, 0.0
    %v124 = vadd.f32 %v106, %v121
    %v125 = vadd.f32 %v107, %v122
    %v126 = vadd.f32 %v108, %v123
    %127 = vset.pattern.permute.xlu0 5
    %128 = vperm.xlu0 %127, %v32
    %v129 = vpop.permute.xlu0 %128
    %130 = vset.pattern.permute.xlu0 5
    %131 = vperm.xlu0 %130, %v33
    %v132 = vpop.permute.xlu0 %131
    %133 = vset.pattern.permute.xlu0 5
    %134 = vperm.xlu0 %133, %v34
    %v135 = vpop.permute.xlu0 %134
    %vm136 = vcmp.eq.s32.totalorder %v129, %v36
    %vm137 = vcmp.eq.s32.totalorder %v132, %v36
    %vm138 = vcmp.eq.s32.totalorder %v135, %v36
    %v139 = vsel %vm136, 1.0, 0.0
    %v140 = vsel %vm137, 1.0, 0.0
    %v141 = vsel %vm138, 1.0, 0.0
    %v142 = vadd.f32 %v124, %v139
    %v143 = vadd.f32 %v125, %v140
    %v144 = vadd.f32 %v126, %v141
    %145 = vset.pattern.permute.xlu0 6
    %146 = vperm.xlu0 %145, %v32
    %v147 = vpop.permute.xlu0 %146
    %148 = vset.pattern.permute.xlu0 6
    %149 = vperm.xlu0 %148, %v33
    %v150 = vpop.permute.xlu0 %149
    %151 = vset.pattern.permute.xlu0 6
    %152 = vperm.xlu0 %151, %v34
    %v153 = vpop.permute.xlu0 %152
    %vm154 = vcmp.eq.s32.totalorder %v147, %v36
    %vm155 = vcmp.eq.s32.totalorder %v150, %v36
    %vm156 = vcmp.eq.s32.totalorder %v153, %v36
    %v157 = vsel %vm154, 1.0, 0.0
    %v158 = vsel %vm155, 1.0, 0.0
    %v159 = vsel %vm156, 1.0, 0.0
    %v160 = vadd.f32 %v142, %v157
    %v161 = vadd.f32 %v143, %v158
    %v162 = vadd.f32 %v144, %v159
    %163 = vset.pattern.permute.xlu0 7
    %164 = vperm.xlu0 %163, %v32
    %v165 = vpop.permute.xlu0 %164
    %166 = vset.pattern.permute.xlu0 7
    %167 = vperm.xlu0 %166, %v33
    %v168 = vpop.permute.xlu0 %167
    %169 = vset.pattern.permute.xlu0 7
    %170 = vperm.xlu0 %169, %v34
    %v171 = vpop.permute.xlu0 %170
    %vm172 = vcmp.eq.s32.totalorder %v165, %v36
    %vm173 = vcmp.eq.s32.totalorder %v168, %v36
    %vm174 = vcmp.eq.s32.totalorder %v171, %v36
    %v175 = vsel %vm172, 1.0, 0.0
    %v176 = vsel %vm173, 1.0, 0.0
    %v177 = vsel %vm174, 1.0, 0.0
    %v178 = vadd.f32 %v160, %v175
    %v179 = vadd.f32 %v161, %v176
    %v180 = vadd.f32 %v162, %v177
    %v181 = vpack.c.bf16 %v179, %v178
    %v182 = vpack.c.bf16 %v180, %v180
    %v183 = vld [vmem:[#allocation2] sm:$0xf]
    %v184 = vld [vmem:[#allocation2 + $0x4] sm:$0xf]
    %v185 = vld [vmem:[#allocation2 + $0x8] sm:$0xf]
    %v186 = vld [vmem:[#allocation2 + $0xc] sm:$0xf]
    %v187 = vld [vmem:[#allocation2 + $0x10] sm:$0xf]
    %v188 = vld [vmem:[#allocation2 + $0x14] sm:$0xf]
    %v189 = vld [vmem:[#allocation2 + $0x18] sm:$0xf]
    %v190 = vld [vmem:[#allocation2 + $0x1c] sm:$0xf]
    %v191 = vld [vmem:[#allocation2 + $0x20] sm:$0xf]
    %v192 = vld [vmem:[#allocation2 + $0x24] sm:$0xf]
    %v193 = vld [vmem:[#allocation2 + $0x28] sm:$0xf]
    %v194 = vld [vmem:[#allocation2 + $0x2c] sm:$0xf]
    %v195 = vld [vmem:[#allocation2 + $0x30] sm:$0xf]
    %v196 = vld [vmem:[#allocation2 + $0x34] sm:$0xf]
    %v197 = vld [vmem:[#allocation2 + $0x38] sm:$0xf]
    %v198 = vld [vmem:[#allocation2 + $0x3c] sm:$0xf]
    %v215 = vunpack.c.l.b16 %v183
    %v216 = vunpack.c.l.b16 %v184
    %v217 = vunpack.c.l.b16 %v185
    %v218 = vunpack.c.l.b16 %v186
    %v219 = vunpack.c.l.b16 %v187
    %v220 = vunpack.c.l.b16 %v188
    %v221 = vunpack.c.l.b16 %v189
    %v222 = vunpack.c.l.b16 %v190
    %v223 = vunpack.c.l.b16 %v191
    %v224 = vunpack.c.l.b16 %v192
    %v225 = vunpack.c.l.b16 %v193
    %v226 = vunpack.c.l.b16 %v194
    %v227 = vunpack.c.l.b16 %v195
    %v228 = vunpack.c.l.b16 %v196
    %v229 = vunpack.c.l.b16 %v197
    %v230 = vunpack.c.l.b16 %v198
    %v231 = vpack.c.b16 %v216, %v215
    %v232 = vpack.c.b16 %v218, %v217
    %v233 = vpack.c.b16 %v220, %v219
    %v234 = vpack.c.b16 %v222, %v221
    %v235 = vpack.c.b16 %v224, %v223
    %v236 = vpack.c.b16 %v226, %v225
    %v237 = vpack.c.b16 %v228, %v227
    %v238 = vpack.c.b16 %v230, %v229
    %247 = vmatpush.bf16.msra.mxu0 %v238
    %248 = vmatpush.bf16.msra.mxu0 %v237
    %249 = vmatpush.bf16.msra.mxu0 %v236
    %250 = vmatpush.bf16.msra.mxu0 %v235
    %251 = vmatpush.bf16.msra.mxu0 %v234
    %252 = vmatpush.bf16.msra.mxu0 %v233
    %253 = vmatpush.bf16.msra.mxu0 %v232
    %254 = vmatpush.bf16.msra.mxu0 %v231
    %255 = vmatmul.bf16.gmra.mxu0 %v181
    %v256 = vpop.f32.mrf.mxu0
    %v257 = vadd.f32 0.0, %v256
    %v258 = vpop.f32.mrf.mxu0
    %v259 = vadd.f32 0.0, %v258
    %260 = vmatmul.bf16.gmra.mxu0 %v182
    %v261 = vpop.f32.mrf.mxu0
    %v262 = vadd.f32 0.0, %v261
    %v263 = vpop.f32.mrf.mxu0
    %264 = vdwg.mxu0
    %v266 = vrot.slane %v262, 1
    %v267 = vperm.slane %v262, 0
    %v268 = vperm.slane %v266, 0
    %v271 = vmul.f32 %v257, %v267
    %v272 = vmul.f32 %v259, %v268
    %vm273 = vcmask 261120
    %v274 = vsel %vm273, %v271, 0.0
    %275 = vadd.xlane.f32.xlu0 %v274
    %v276 = vpop.xlane.xlu0 %275
    %v277 = vsel %vm273, %v272, 0.0
    %278 = vadd.xlane.f32.xlu0 %v277
    %v279 = vpop.xlane.xlu0 %278
    %v280 = vrot.slane %v276, 4
    %v281 = vmax.f32 %v276, %v280
    %v282 = vrot.slane %v281, 2
    %v283 = vmax.f32 %v281, %v282
    %v284 = vrot.slane %v283, 1
    %v285 = vmax.f32 %v283, %v284
    %v286 = vrot.slane %v279, 4
    %v287 = vmax.f32 %v279, %v286
    %v288 = vrot.slane %v287, 2
    %v289 = vmax.f32 %v287, %v288
    %v290 = vrot.slane %v289, 1
    %v291 = vmax.f32 %v289, %v290
    %v292 = vsub.f32 %v276, %v285
    %v293 = vsub.f32 %v279, %v291
    %v294 = vmul.f32 %v292, 1.442695
    %v295 = vpow.pop %v294
    %v296 = vmul.f32 %v293, 1.442695
    %v297 = vpow.pop %v296
    %v298 = vrot.slane %v295, 4
    %v299 = vadd.f32 %v295, %v298
    %v300 = vrot.slane %v299, 2
    %v301 = vadd.f32 %v299, %v300
    %v302 = vrot.slane %v301, 1
    %v303 = vadd.f32 %v301, %v302
    %v304 = vrot.slane %v297, 4
    %v305 = vadd.f32 %v297, %v304
    %v306 = vrot.slane %v305, 2
    %v307 = vadd.f32 %v305, %v306
    %v308 = vrot.slane %v307, 1
    %v309 = vadd.f32 %v307, %v308
    %v310 = vrcp.pop %v303
    %v311 = vrcp.pop %v309
    %v312 = vmul.f32 %v295, %v310
    %v313 = vmul.f32 %v297, %v311
    %v314 = vmul.f32 %v312, %v257
    %v315 = vmul.f32 %v313, %v259
    %vm316 = vcmask 523520
    %v317 = vsel %vm316, %v314, 0.0
    %v318 = vrot.slane %v317, 4
    %v319 = vadd.f32 %v317, %v318
    %v320 = vrot.slane %v319, 2
    %v321 = vadd.f32 %v319, %v320
    %v322 = vrot.slane %v321, 1
    %v323 = vadd.f32 %v321, %v322
    %v324 = vsel %vm316, %v315, 0.0
    %v325 = vrot.slane %v324, 4
    %v326 = vadd.f32 %v324, %v325
    %v327 = vrot.slane %v326, 2
    %v328 = vadd.f32 %v326, %v327
    %v329 = vrot.slane %v328, 1
    %v330 = vadd.f32 %v328, %v329
    %331 = vrot.lane.b32.xlu0 %v267, 32
    %v332 = vpop.permute.xlu0 %331
    %333 = vrot.lane.b32.xlu0 %v268, 32
    %v334 = vpop.permute.xlu0 %333
    %v337 = vadd.f32 %v323, %v332
    %v338 = vadd.f32 %v330, %v334
    %v339 = vperm.slane %v337, 0
    %v340 = vperm.slane %v338, 0
    %v341 = vmul.f32 %v257, %v339
    %v342 = vmul.f32 %v259, %v340
    %345 = vrot.lane.b32.xlu0 %v341, 96
    %v346 = vpop.permute.xlu0 %345
    %347 = vrot.lane.b32.xlu0 %v342, 96
    %v348 = vpop.permute.xlu0 %347
    %v351 = vsel %vm273, %v346, 0.0
    %352 = vadd.xlane.f32.xlu0 %v351
    %v353 = vpop.xlane.xlu0 %352
    %v354 = vsel %vm273, %v348, 0.0
    %355 = vadd.xlane.f32.xlu0 %v354
    %v356 = vpop.xlane.xlu0 %355
    %v357 = vrot.slane %v353, 4
    %v358 = vmax.f32 %v353, %v357
    %v359 = vrot.slane %v358, 2
    %v360 = vmax.f32 %v358, %v359
    %v361 = vrot.slane %v360, 1
    %v362 = vmax.f32 %v360, %v361
    %v363 = vrot.slane %v356, 4
    %v364 = vmax.f32 %v356, %v363
    %v365 = vrot.slane %v364, 2
    %v366 = vmax.f32 %v364, %v365
    %v367 = vrot.slane %v366, 1
    %v368 = vmax.f32 %v366, %v367
    %v369 = vsub.f32 %v353, %v362
    %v370 = vsub.f32 %v356, %v368
    %v371 = vmul.f32 %v369, 1.442695
    %v372 = vpow.pop %v371
    %v373 = vmul.f32 %v370, 1.442695
    %v374 = vpow.pop %v373
    %v375 = vrot.slane %v372, 4
    %v376 = vadd.f32 %v372, %v375
    %v377 = vrot.slane %v376, 2
    %v378 = vadd.f32 %v376, %v377
    %v379 = vrot.slane %v378, 1
    %v380 = vadd.f32 %v378, %v379
    %v381 = vrot.slane %v374, 4
    %v382 = vadd.f32 %v374, %v381
    %v383 = vrot.slane %v382, 2
    %v384 = vadd.f32 %v382, %v383
    %v385 = vrot.slane %v384, 1
    %v386 = vadd.f32 %v384, %v385
    %v387 = vrcp.pop %v380
    %v388 = vrcp.pop %v386
    %v389 = vmul.f32 %v372, %v387
    %v390 = vmul.f32 %v374, %v388
    %v391 = vmul.f32 %v389, %v257
    %v392 = vmul.f32 %v390, %v259
    %vm393 = vcmask 785920
    %v394 = vsel %vm393, %v391, 0.0
    %v395 = vrot.slane %v394, 4
    %v396 = vadd.f32 %v394, %v395
    %v397 = vrot.slane %v396, 2
    %v398 = vadd.f32 %v396, %v397
    %v399 = vrot.slane %v398, 1
    %v400 = vadd.f32 %v398, %v399
    %v401 = vsel %vm393, %v392, 0.0
    %v402 = vrot.slane %v401, 4
    %v403 = vadd.f32 %v401, %v402
    %v404 = vrot.slane %v403, 2
    %v405 = vadd.f32 %v403, %v404
    %v406 = vrot.slane %v405, 1
    %v407 = vadd.f32 %v405, %v406
    %410 = vrot.lane.b32.xlu0 %v337, 32
    %v411 = vpop.permute.xlu0 %410
    %412 = vrot.lane.b32.xlu0 %v338, 32
    %v413 = vpop.permute.xlu0 %412
    %v416 = vadd.f32 %v400, %v411
    %v417 = vadd.f32 %v407, %v413
    %v418 = vperm.slane %v416, 0
    %v419 = vperm.slane %v417, 0
    %v420 = vmul.f32 %v257, %v418
    %v421 = vmul.f32 %v259, %v419
    %424 = vrot.lane.b32.xlu0 %v420, 64
    %v425 = vpop.permute.xlu0 %424
    %426 = vrot.lane.b32.xlu0 %v421, 64
    %v427 = vpop.permute.xlu0 %426
    %v430 = vsel %vm273, %v425, 0.0
    %431 = vadd.xlane.f32.xlu0 %v430
    %v432 = vpop.xlane.xlu0 %431
    %v433 = vsel %vm273, %v427, 0.0
    %434 = vadd.xlane.f32.xlu0 %v433
    %v435 = vpop.xlane.xlu0 %434
    %v436 = vrot.slane %v432, 4
    %v437 = vmax.f32 %v432, %v436
    %v438 = vrot.slane %v437, 2
    %v439 = vmax.f32 %v437, %v438
    %v440 = vrot.slane %v439, 1
    %v441 = vmax.f32 %v439, %v440
    %v442 = vrot.slane %v435, 4
    %v443 = vmax.f32 %v435, %v442
    %v444 = vrot.slane %v443, 2
    %v445 = vmax.f32 %v443, %v444
    %v446 = vrot.slane %v445, 1
    %v447 = vmax.f32 %v445, %v446
    %v448 = vsub.f32 %v432, %v441
    %v449 = vsub.f32 %v435, %v447
    %v450 = vmul.f32 %v448, 1.442695
    %v451 = vpow.pop %v450
    %v452 = vmul.f32 %v449, 1.442695
    %v453 = vpow.pop %v452
    %v454 = vrot.slane %v451, 4
    %v455 = vadd.f32 %v451, %v454
    %v456 = vrot.slane %v455, 2
    %v457 = vadd.f32 %v455, %v456
    %v458 = vrot.slane %v457, 1
    %v459 = vadd.f32 %v457, %v458
    %v460 = vrot.slane %v453, 4
    %v461 = vadd.f32 %v453, %v460
    %v462 = vrot.slane %v461, 2
    %v463 = vadd.f32 %v461, %v462
    %v464 = vrot.slane %v463, 1
    %v465 = vadd.f32 %v463, %v464
    %v466 = vrcp.pop %v459
    %v467 = vrcp.pop %v465
    %v468 = vmul.f32 %v451, %v466
    %v469 = vmul.f32 %v453, %v467
    %v470 = vmul.f32 %v468, %v257
    %v471 = vmul.f32 %v469, %v259
    %vm472 = vcmask 1048320
    %v473 = vsel %vm472, %v470, 0.0
    %v474 = vrot.slane %v473, 4
    %v475 = vadd.f32 %v473, %v474
    %v476 = vrot.slane %v475, 2
    %v477 = vadd.f32 %v475, %v476
    %v478 = vrot.slane %v477, 1
    %v479 = vadd.f32 %v477, %v478
    %v480 = vsel %vm472, %v471, 0.0
    %v481 = vrot.slane %v480, 4
    %v482 = vadd.f32 %v480, %v481
    %v483 = vrot.slane %v482, 2
    %v484 = vadd.f32 %v482, %v483
    %v485 = vrot.slane %v484, 1
    %v486 = vadd.f32 %v484, %v485
    %489 = vrot.lane.b32.xlu0 %v416, 32
    %v490 = vpop.permute.xlu0 %489
    %491 = vrot.lane.b32.xlu0 %v417, 32
    %v492 = vpop.permute.xlu0 %491
    %v495 = vadd.f32 %v479, %v490
    %v496 = vadd.f32 %v486, %v492
    %v497 = vpack.c.bf16 %v495, %v495
    %v498 = vpack.c.bf16 %v496, %v496
    %v499 = vld [vmem:[%s2] sm:$0xf]
    %v500 = vld [vmem:[%s2 + $0x4] sm:$0xf]
    %v501 = vld [vmem:[%s2 + $0x8] sm:$0xf]
    %v502 = vld [vmem:[%s2 + $0xc] sm:$0xf]
    %v505 = vunpack.c.l.b16 %v497
    %v506 = vunpack.c.l.b16 %v498
    %v507 = vrot.slane %v506, 7
    %vm508 = vcmask 1041409
    %v509 = vsel %vm508, %v507, %v505
    %v510 = vpack.c.b16 %v509, %v509
    %511 = vrot.lane.b32.xlu0 %v510, 32
    %v512 = vpop.permute.xlu0 %511
    %v517 = vunpack.c.l.b16 %v499
    %v518 = vunpack.c.l.b16 %v500
    %v519 = vunpack.c.l.b16 %v501
    %v520 = vunpack.c.l.b16 %v502
    %v521 = vpack.c.b16 %v518, %v517
    %v522 = vpack.c.b16 %v520, %v519
    %v526 = vsel %vm273, %v512, 0
    %528 = vmatpush.bf16.msra.mxu0 0
    %529 = vmatpush.bf16.msra.mxu0 0
    %530 = vmatpush.bf16.msra.mxu0 0
    %531 = vmatpush.bf16.msra.mxu0 0
    %532 = vmatpush.bf16.msra.mxu0 0
    %533 = vmatpush.bf16.msra.mxu0 0
    %534 = vmatpush.bf16.msra.mxu0 %v522
    %535 = vmatpush.bf16.msra.mxu0 %v521
    %536 = vmatmul.bf16.gmra.mxu0 %v526
    %v537 = vpop.f32.mrf.mxu0
    %v538 = vadd.f32 0.0, %v537
    %v539 = vpop.f32.mrf.mxu0
    %540 = vdwg.mxu0
    %541 = vst [vmem:[#allocation5] sm:$0x3] %v538
    // Predicated region
    $region18: #{tpu_custom_call.1} parent=1 // pred_check
      _
    $region19: #{tpu_custom_call.1} parent=1 // pred_check_branch
      %543 = sbr.rel (0) target = $region21
    $region20: #{tpu_custom_call.1} parent=1 // pred_region
      %545 = vsyncadd [#allocation4], 0
      %s547 = sshll.u32 [#allocation5], 4
      %s548 = int_to_ptr.vmem [resolvable:$true] %s547
      %s549 = sshll.u32 %s3, 4
      %s550 = int_to_ptr.hbm [resolvable:$true] %s549
      %552 = dma.vmem_to_hbm [thread:$0]  %s548, 32, %s550, [#allocation4]
    $region21: #{tpu_custom_call.1} parent=1 // pred_fallthru
      _
    // Predicated region
    $region22: #{tpu_custom_call.1} parent=1 // pred_check
      _
    $region23: #{tpu_custom_call.1} parent=1 // pred_check_branch
      %554 = sbr.rel (0) target = $region25
    $region24: #{tpu_custom_call.1} parent=1 // pred_region
      %556 = dma.done [#allocation4], 32
    $region25: #{tpu_custom_call.1} parent=1 // pred_fallthru
      _
    %557 = vsyncpa [#allocation3], 1
    %558 = vsyncpa [#allocation4], 1

</llo_original>
